<compile_context>
chip_gen: v7x
topology: tpu7x:2x2x1
jax: 0.10.0
libtpu: 0.0.40
codegen_flags: <defaults>
</compile_context>

<pallas_src>
import jax
import jax.numpy as jnp
from jax.experimental import pallas as pl
from jax.experimental.pallas import tpu as pltpu


def vnet_kernel(x_ref, w0_ref, b0_ref, w1_ref, b1_ref, o_ref):
    # fc0: (h_dim, s_dim) @ (s_dim, TB) -> (h_dim, TB), accumulate in f32 on the MXU
    h = jnp.dot(w0_ref[...], x_ref[...], preferred_element_type=jnp.float32)
    # bias (h_dim, 1) broadcasts across lanes; ReLU on the VPU in f32 (v5e-safe)
    h = jnp.maximum(h + b0_ref[...], 0.0)
    # fc1: (1, h_dim) @ (h_dim, TB) -> (1, TB); cast h to the streaming dtype of w1
    h = h.astype(w1_ref.dtype)
    out = jnp.dot(w1_ref[...], h, preferred_element_type=jnp.float32)
    # b1 is a scalar living in SMEM (no padded (8,128) VMEM tile / extra DMA)
    o_ref[...] = (out + b1_ref[0, 0]).astype(o_ref.dtype)


def v_net_forward(state, w0, b0, w1, b1, *, block_b=512, compute_dtype=jnp.float32):
    """Pallas forward of V_net.

    state: (B, s_dim) f32;  w0: (s_dim, h_dim);  b0: (h_dim,);  w1: (h_dim, 1);  b1: (1,)
    Returns (B, 1) f32, matching the PyTorch module.

    compute_dtype=jnp.bfloat16 halves HBM traffic for the streamed activations at
    large B (dots still accumulate in f32; bias/ReLU stay in f32).
    """
    B, s_dim = state.shape
    h_dim = w0.shape[1]
    lane = 128

    # Batch-on-lanes layout; weights transposed so both matmuls emit (*, TB).
    x_t = state.T.astype(compute_dtype)                  # (s_dim, B)
    w0_t = w0.T.astype(compute_dtype)                    # (h_dim, s_dim)
    b0_c = b0.reshape(h_dim, 1).astype(jnp.float32)      # (h_dim, 1)
    w1_t = w1.T.astype(compute_dtype)                    # (1, h_dim)
    b1_s = b1.reshape(1, 1).astype(jnp.float32)          # (1, 1) -> SMEM scalar

    # Pick a lane-aligned batch tile and zero-pad B up to a multiple of it.
    # (Weights are <1 KiB, so even TB=2048 double-buffered fits v7x's 64 MiB VMEM.)
    block_b = max(lane, (block_b // lane) * lane)
    tb = max(lane, min(block_b, ((B + lane - 1) // lane) * lane))
    b_pad = ((B + tb - 1) // tb) * tb
    if b_pad != B:
        x_t = jnp.pad(x_t, ((0, 0), (0, b_pad - B)))
    grid = (b_pad // tb,)

    out_t = pl.pallas_call(
        vnet_kernel,
        out_shape=jax.ShapeDtypeStruct((1, b_pad), jnp.float32),
        grid=grid,
        in_specs=[
            pl.BlockSpec((s_dim, tb), lambda i: (0, i)),       # streamed batch tile
            pl.BlockSpec((h_dim, s_dim), lambda i: (0, 0)),    # resident W0ᵀ
            pl.BlockSpec((h_dim, 1), lambda i: (0, 0)),        # resident b0
            pl.BlockSpec((1, h_dim), lambda i: (0, 0)),        # resident W1ᵀ
            pl.BlockSpec(memory_space=pltpu.MemorySpace.SMEM),  # b1 scalar in SMEM
        ],
        out_specs=pl.BlockSpec((1, tb), lambda i: (0, i)),     # lane-dense output
        compiler_params=pltpu.CompilerParams(
            dimension_semantics=("parallel",),                 # v7x: shard across TCs
        ),
    )(x_t, w0_t, b0_c, w1_t, b1_s)

    # Back to the PyTorch-facing (B, 1) shape.
    return out_t[:, :B].T


def init_params(key, s_dim, h_dim):
    """Deterministic init mimicking nn.Linear's uniform(-1/sqrt(fan_in), 1/sqrt(fan_in))."""
    k0, k1, k2, k3 = jax.random.split(key, 4)
    lim0 = 1.0 / jnp.sqrt(jnp.float32(s_dim))
    lim1 = 1.0 / jnp.sqrt(jnp.float32(h_dim))
    w0 = jax.random.uniform(k0, (s_dim, h_dim), jnp.float32, -lim0, lim0)
    b0 = jax.random.uniform(k1, (h_dim,), jnp.float32, -lim0, lim0)
    w1 = jax.random.uniform(k2, (h_dim, 1), jnp.float32, -lim1, lim1)
    b1 = jax.random.uniform(k3, (1,), jnp.float32, -lim1, lim1)
    return w0, b0, w1, b1


def _ref(state, w0, b0, w1, b1):
    return jnp.maximum(state @ w0 + b0, 0.0) @ w1 + b1


if __name__ == "__main__":
    key = jax.random.PRNGKey(0)
    s_dim, h_dim = 4, 32                       # cartpole-ish: 4-dim state, 32 hidden
    k_small, k_big, k_params = jax.random.split(key, 3)
    w0, b0, w1, b1 = init_params(k_params, s_dim, h_dim)

    # 1) small batch (single padded tile, masked only by the zero-padding we add)
    state_s = jax.random.normal(k_small, (8, s_dim), jnp.float32)
    out_s = jax.block_until_ready(v_net_forward(state_s, w0, b0, w1, b1))
    ref_s = _ref(state_s, w0, b0, w1, b1)
    assert out_s.shape == (8, 1)
    assert jnp.allclose(out_s, ref_s, atol=1e-4), "small-batch mismatch vs reference"

    # 2) larger batch exercising the multi-tile grid (grid=(4,) with TB=256)
    state_b = jax.random.normal(k_big, (1024, s_dim), jnp.float32)
    out_b = jax.block_until_ready(v_net_forward(state_b, w0, b0, w1, b1, block_b=256))
    ref_b = _ref(state_b, w0, b0, w1, b1)
    assert out_b.shape == (1024, 1)
    assert jnp.allclose(out_b, ref_b, atol=1e-4), "large-batch mismatch vs reference"

    # 3) bf16 streaming path (halved HBM traffic for activations; f32 accumulation)
    out_h = jax.block_until_ready(
        v_net_forward(state_b, w0, b0, w1, b1, block_b=256, compute_dtype=jnp.bfloat16))
    assert jnp.allclose(out_h, ref_b, atol=1e-1), "bf16-path mismatch vs reference"

    print("KERNEL_OK")
</pallas_src>

<mosaic_0001>
module attributes {stable_mosaic.version = 11 : i64} {
  func.func @vnet_kernel(%arg0: i32, %arg1: memref<4x128xf32, #tpu.memory_space<vmem>>, %arg2: memref<32x4xf32, #tpu.memory_space<vmem>>, %arg3: memref<32x1xf32, #tpu.memory_space<vmem>>, %arg4: memref<1x32xf32, #tpu.memory_space<vmem>>, %arg5: memref<1x1xf32, #tpu.memory_space<smem>>, %arg6: memref<1x128xf32, #tpu.memory_space<vmem>>) attributes {dimension_semantics = [#tpu.dimension_semantics<parallel>], iteration_bounds = array<i64: 1>, scalar_prefetch = 0 : i64, scratch_operands = 0 : i64, tpu.core_type = #tpu.core_type<tc>, window_params = [{transform_indices = @transform_0, window_bounds = array<i64: 4, 128>}, {pipeline_mode = #tpu.pipeline_mode<synchronous>, transform_indices = @transform_1, window_bounds = array<i64: 32, 4>}, {pipeline_mode = #tpu.pipeline_mode<synchronous>, transform_indices = @transform_2, window_bounds = array<i64: 32, 1>}, {pipeline_mode = #tpu.pipeline_mode<synchronous>, transform_indices = @transform_3, window_bounds = array<i64: 1, 32>}, {transform_indices = @transform_4, window_bounds = array<i64: 1, 1>}, {transform_indices = @transform_5, window_bounds = array<i64: 1, 128>}]} {
    %c0 = arith.constant 0 : index
    %c0_0 = arith.constant 0 : index
    %0 = vector.load %arg2[%c0, %c0_0] : memref<32x4xf32, #tpu.memory_space<vmem>>, vector<32x4xf32>
    %c0_1 = arith.constant 0 : index
    %c0_2 = arith.constant 0 : index
    %1 = vector.load %arg1[%c0_1, %c0_2] : memref<4x128xf32, #tpu.memory_space<vmem>>, vector<4x128xf32>
    %cst = arith.constant dense<0.000000e+00> : vector<32x128xf32>
    %2 = tpu.matmul %0, %1, %cst {dimension_numbers = #tpu.dot_dimension_numbers<[1], [0], [0], [1], [0, 0, 1, 1], [], []>} : vector<32x4xf32>, vector<4x128xf32>, vector<32x128xf32> -> vector<32x128xf32>
    %c0_3 = arith.constant 0 : index
    %c0_4 = arith.constant 0 : index
    %3 = vector.load %arg3[%c0_3, %c0_4] : memref<32x1xf32, #tpu.memory_space<vmem>>, vector<32x1xf32>
    %4 = vector.broadcast %3 : vector<32x1xf32> to vector<32x128xf32>
    %5 = arith.addf %2, %4 : vector<32x128xf32>
    %cst_5 = arith.constant 0.000000e+00 : f32
    %6 = vector.broadcast %cst_5 : f32 to vector<32x128xf32>
    %7 = arith.maximumf %5, %6 : vector<32x128xf32>
    %c0_6 = arith.constant 0 : index
    %c0_7 = arith.constant 0 : index
    %8 = vector.load %arg4[%c0_6, %c0_7] : memref<1x32xf32, #tpu.memory_space<vmem>>, vector<1x32xf32>
    %cst_8 = arith.constant dense<0.000000e+00> : vector<1x128xf32>
    %9 = tpu.matmul %8, %7, %cst_8 {dimension_numbers = #tpu.dot_dimension_numbers<[1], [0], [0], [1], [0, 0, 1, 1], [], []>} : vector<1x32xf32>, vector<32x128xf32>, vector<1x128xf32> -> vector<1x128xf32>
    %c0_9 = arith.constant 0 : index
    %c0_10 = arith.constant 0 : index
    %10 = memref.load %arg5[%c0_9, %c0_10] : memref<1x1xf32, #tpu.memory_space<smem>>
    %11 = vector.broadcast %10 : f32 to vector<1x128xf32>
    %12 = arith.addf %9, %11 : vector<1x128xf32>
    %c0_11 = arith.constant 0 : index
    %c0_12 = arith.constant 0 : index
    %13 = vector.load %arg6[%c0_11, %c0_12] : memref<1x128xf32, #tpu.memory_space<vmem>>, vector<1x128xf32>
    tpu.vector_store %arg6[%c0_11, %c0_12], %12 {strides = array<i32>} : memref<1x128xf32, #tpu.memory_space<vmem>>, vector<1x128xf32>,
    return
  }
  func.func @transform_0(%arg0: i32) -> (i32, i32) {
    %c0_i32 = arith.constant 0 : i32
    %c0_i32_0 = arith.constant 0 : i32
    return %c0_i32, %arg0 : i32, i32
  }
  func.func @transform_1(%arg0: i32) -> (i32, i32) {
    %c0_i32 = arith.constant 0 : i32
    %c0_i32_0 = arith.constant 0 : i32
    %c0_i32_1 = arith.constant 0 : i32
    return %c0_i32, %c0_i32_0 : i32, i32
  }
  func.func @transform_2(%arg0: i32) -> (i32, i32) {
    %c0_i32 = arith.constant 0 : i32
    %c0_i32_0 = arith.constant 0 : i32
    %c0_i32_1 = arith.constant 0 : i32
    return %c0_i32, %c0_i32_0 : i32, i32
  }
  func.func @transform_3(%arg0: i32) -> (i32, i32) {
    %c0_i32 = arith.constant 0 : i32
    %c0_i32_0 = arith.constant 0 : i32
    %c0_i32_1 = arith.constant 0 : i32
    return %c0_i32, %c0_i32_0 : i32, i32
  }
  func.func @transform_4(%arg0: i32) -> (i32, i32) {
    %c0_i32 = arith.constant 0 : i32
    %c0_i32_0 = arith.constant 0 : i32
    %c0_i32_1 = arith.constant 0 : i32
    return %c0_i32, %c0_i32_0 : i32, i32
  }
  func.func @transform_5(%arg0: i32) -> (i32, i32) {
    %c0_i32 = arith.constant 0 : i32
    %c0_i32_0 = arith.constant 0 : i32
    return %c0_i32, %arg0 : i32, i32
  }
}

</mosaic_0001>

<llo_original>
// kernel: tpu_custom_call.1
$region0: #{tpu_custom_call.1}
  #allocation0 [shape = 'u32[]', space=smem, size = 0x4, offset = 0x4, fixed_abs, tag = 'smem constant byte address 0x4 - core index']
  #allocation1 [shape = 'u32[144,128]{1,0:T(1,128)}', space=vmem, size = 0x12000, scoped, tag = 'internal scratch']
  #allocation2 [shape = 'f32[1,1]{1,0:T(1,128)S(6)}', space=smem, size = 0x200, scoped, tag = 'scoped memory for tpu_custom_call.1']
  %s0 = inlined_call_operand.vmem [shape: f32[4,128], index: 0, kind: input, shape index: {}]
  %s1 = inlined_call_operand.vmem [shape: f32[32,4], index: 1, kind: input, shape index: {}]
  %s2 = inlined_call_operand.vmem [shape: f32[32,1], index: 2, kind: input, shape index: {}]
  %s3 = inlined_call_operand.vmem [shape: f32[1,32], index: 3, kind: input, shape index: {}]
  %s4 = inlined_call_operand.<no memory space> [shape: f32[1,1], index: 4, kind: input, shape index: {}]
  %s5 = inlined_call_operand.hbm [shape: f32[1,128], index: 5, kind: output, shape index: {}]
  %s6 = sld [smem:[#allocation0]]
  $region30: #{tpu_custom_call.1} parent=0
    _
  %s8 = ssub.s32 1, %s6
  %s9 = scalar_select 0, %s8, %s6
  %10 = sst [smem:[#allocation2]] %s4
  $region1: #{tpu_custom_call.1} parent=0
    #allocation3 [shape = 'u8[512]{0}', space=vmem, size = 0x400, scoped, tag = 'output window, operand 0, single buffered']
    #allocation4 [shape = 's32[1]{0}', space=sflag, size = 0x4, scoped, tag = 'scoped memory for tpu_custom_call.1']
    %11 = vsyncpa [#allocation4], 0
    // Predicated region
    $region2: #{tpu_custom_call.1} parent=1 // pred_check
      _
    $region3: #{tpu_custom_call.1} parent=1 // pred_check_branch
      %13 = sbr.rel (0) target = $region5
    $region4: #{tpu_custom_call.1} parent=1 // pred_region
      _
    $region5: #{tpu_custom_call.1} parent=1 // pred_fallthru
      _
    // Predicated region
    $region6: #{tpu_custom_call.1} parent=1 // pred_check
      _
    $region7: #{tpu_custom_call.1} parent=1 // pred_check_branch
      %15 = sbr.rel (0) target = $region9
    $region8: #{tpu_custom_call.1} parent=1 // pred_region
      _
    $region9: #{tpu_custom_call.1} parent=1 // pred_fallthru
      _
    // Predicated region
    $region10: #{tpu_custom_call.1} parent=1 // pred_check
      _
    $region11: #{tpu_custom_call.1} parent=1 // pred_check_branch
      %17 = sbr.rel (0) target = $region13
    $region12: #{tpu_custom_call.1} parent=1 // pred_region
      _
    $region13: #{tpu_custom_call.1} parent=1 // pred_fallthru
      _
    // Predicated region
    $region14: #{tpu_custom_call.1} parent=1 // pred_check
      _
    $region15: #{tpu_custom_call.1} parent=1 // pred_check_branch
      %19 = sbr.rel (0) target = $region17
    $region16: #{tpu_custom_call.1} parent=1 // pred_region
      _
    $region17: #{tpu_custom_call.1} parent=1 // pred_fallthru
      _
    // Predicated region
    $region18: #{tpu_custom_call.1} parent=1 // pred_check
      _
    $region19: #{tpu_custom_call.1} parent=1 // pred_check_branch
      %21 = sbr.rel (0) target = $region21
    $region20: #{tpu_custom_call.1} parent=1 // pred_region
      _
    $region21: #{tpu_custom_call.1} parent=1 // pred_fallthru
      _
    %v22 = vld [vmem:[%s1] sm:$0xff]
    %v23 = vld [vmem:[%s1 + $0x8] sm:$0xff]
    %v24 = vld [vmem:[%s1 + $0x10] sm:$0xff]
    %v25 = vld [vmem:[%s1 + $0x18] sm:$0xff]
    %v26 = vld [vmem:[%s0] sm:$0xf]
    %v27 = vld [vmem:[%s2] sm:$0xff]
    %v28 = vld [vmem:[%s2 + $0x8] sm:$0xff]
    %v29 = vld [vmem:[%s2 + $0x10] sm:$0xff]
    %v30 = vld [vmem:[%s2 + $0x18] sm:$0xff]
    %32 = vset.pattern.permute.xlu0 0
    %33 = vperm.xlu0 %32, %v27
    %v34 = vpop.permute.xlu0 %33
    %37 = vset.pattern.permute.xlu0 0
    %38 = vperm.xlu0 %37, %v28
    %v39 = vpop.permute.xlu0 %38
    %42 = vset.pattern.permute.xlu0 0
    %43 = vperm.xlu0 %42, %v29
    %v44 = vpop.permute.xlu0 %43
    %47 = vset.pattern.permute.xlu0 0
    %48 = vperm.xlu0 %47, %v30
    %v49 = vpop.permute.xlu0 %48
    %vm51 = vcmask 31744
    %v53 = vsel %vm51, %v22, 0
    %v56 = vsel %vm51, %v23, 0
    %v59 = vsel %vm51, %v24, 0
    %v62 = vsel %vm51, %v25, 0
    %vm64 = vcmask 1043456
    %v66 = vsel %vm64, %v26, 0
    %68 = vmatprep.subr.mxu0 0.0
    %69 = vmatpush1.msra.mxu0 %v66
    %70 = vmatprep.subr.mxu0 0.0
    %71 = vmatpush1.msra.mxu0 0.0
    %72 = vmatprep.subr.mxu0 0.0
    %73 = vmatpush1.msra.mxu0 0.0
    %74 = vmatprep.subr.mxu0 0.0
    %75 = vmatpush1.msra.mxu0 0.0
    %76 = vmatprep.subr.mxu0 0.0
    %77 = vmatpush1.msra.mxu0 0.0
    %78 = vmatprep.subr.mxu0 0.0
    %79 = vmatpush1.msra.mxu0 0.0
    %80 = vmatprep.subr.mxu0 0.0
    %81 = vmatpush1.msra.mxu0 0.0
    %82 = vmatprep.subr.mxu0 0.0
    %83 = vmatpush1.msra.mxu0 0.0
    %84 = vmatprep.subr.mxu0 0.0
    %85 = vmatpush1.msra.mxu0 0.0
    %86 = vmatprep.subr.mxu0 0.0
    %87 = vmatpush1.msra.mxu0 0.0
    %88 = vmatprep.subr.mxu0 0.0
    %89 = vmatpush1.msra.mxu0 0.0
    %90 = vmatprep.subr.mxu0 0.0
    %91 = vmatpush1.msra.mxu0 0.0
    %92 = vmatprep.subr.mxu0 0.0
    %93 = vmatpush1.msra.mxu0 0.0
    %94 = vmatprep.subr.mxu0 0.0
    %95 = vmatpush1.msra.mxu0 0.0
    %96 = vmatprep.subr.mxu0 0.0
    %97 = vmatpush1.msra.mxu0 0.0
    %98 = vmatprep.subr.mxu0 0.0
    %99 = vmatpush1.msra.mxu0 0.0
    %100 = vmatprep.subr.mxu0 0.0
    %101 = vmatpush1.msra.mxu0 0.0
    %102 = vmatprep.subr.mxu0 0.0
    %103 = vmatpush1.msra.mxu0 0.0
    %104 = vmatprep.subr.mxu0 0.0
    %105 = vmatpush1.msra.mxu0 0.0
    %106 = vmatprep.subr.mxu0 0.0
    %107 = vmatpush1.msra.mxu0 0.0
    %108 = vmatprep.subr.mxu0 0.0
    %109 = vmatpush1.msra.mxu0 0.0
    %110 = vmatprep.subr.mxu0 0.0
    %111 = vmatpush1.msra.mxu0 0.0
    %112 = vmatprep.subr.mxu0 0.0
    %113 = vmatpush1.msra.mxu0 0.0
    %114 = vmatprep.subr.mxu0 0.0
    %115 = vmatpush1.msra.mxu0 0.0
    %116 = vmatprep.subr.mxu0 0.0
    %117 = vmatpush1.msra.mxu0 0.0
    %118 = vmatprep.subr.mxu0 0.0
    %119 = vmatpush1.msra.mxu0 0.0
    %120 = vmatprep.subr.mxu0 0.0
    %121 = vmatpush1.msra.mxu0 0.0
    %122 = vmatprep.subr.mxu0 0.0
    %123 = vmatpush1.msra.mxu0 0.0
    %124 = vmatprep.subr.mxu0 0.0
    %125 = vmatpush1.msra.mxu0 0.0
    %126 = vmatprep.subr.mxu0 0.0
    %127 = vmatpush1.msra.mxu0 0.0
    %128 = vmatprep.subr.mxu0 0.0
    %129 = vmatpush1.msra.mxu0 0.0
    %130 = vmatprep.subr.mxu0 0.0
    %131 = vmatpush1.msra.mxu0 0.0
    %132 = vmatprep.mubr.f32.mxu0 0.0
    %133 = vmatmul.mubr.f32.gmra.mrb[0].mxu0 %v53
    %v134 = vpop.f32.mrb[0].mxu0
    %v135 = vadd.f32 %v34, %v134
    %v136 = vpop.f32.mrb[0].mxu0
    %137 = vmatprep.mubr.f32.mxu0 0.0
    %138 = vmatmul.mubr.f32.gmra.mrb[0].mxu0 %v56
    %v139 = vpop.f32.mrb[0].mxu0
    %v140 = vadd.f32 %v39, %v139
    %v141 = vpop.f32.mrb[0].mxu0
    %142 = vmatprep.mubr.f32.mxu0 0.0
    %143 = vmatmul.mubr.f32.gmra.mrb[0].mxu0 %v59
    %v144 = vpop.f32.mrb[0].mxu0
    %v145 = vadd.f32 %v44, %v144
    %v146 = vpop.f32.mrb[0].mxu0
    %147 = vmatprep.mubr.f32.mxu0 0.0
    %148 = vmatmul.mubr.f32.gmra.mrb[0].mxu0 %v62
    %v149 = vpop.f32.mrb[0].mxu0
    %v150 = vadd.f32 %v49, %v149
    %v151 = vpop.f32.mrb[0].mxu0
    %152 = vdwg.mxu0
    %v153 = vmax.f32 %v135, 0.0
    %v154 = vmax.f32 %v140, 0.0
    %v155 = vmax.f32 %v145, 0.0
    %v156 = vmax.f32 %v150, 0.0
    %v157 = vld [vmem:[%s3] sm:$0x1]
    %s158 = sld [smem:[#allocation2]]
    %v159 = vstv %s158
    %vm160 = vcmask 261120
    %v162 = vsel %vm160, %v157, 0
    %164 = vmatprep.subr.mxu0 0.0
    %165 = vmatpush1.msra.mxu0 %v153
    %166 = vmatprep.subr.mxu0 0.0
    %167 = vmatpush1.msra.mxu0 %v154
    %168 = vmatprep.subr.mxu0 0.0
    %169 = vmatpush1.msra.mxu0 %v155
    %170 = vmatprep.subr.mxu0 0.0
    %171 = vmatpush1.msra.mxu0 %v156
    %172 = vmatprep.subr.mxu0 0.0
    %173 = vmatpush1.msra.mxu0 0.0
    %174 = vmatprep.subr.mxu0 0.0
    %175 = vmatpush1.msra.mxu0 0.0
    %176 = vmatprep.subr.mxu0 0.0
    %177 = vmatpush1.msra.mxu0 0.0
    %178 = vmatprep.subr.mxu0 0.0
    %179 = vmatpush1.msra.mxu0 0.0
    %180 = vmatprep.subr.mxu0 0.0
    %181 = vmatpush1.msra.mxu0 0.0
    %182 = vmatprep.subr.mxu0 0.0
    %183 = vmatpush1.msra.mxu0 0.0
    %184 = vmatprep.subr.mxu0 0.0
    %185 = vmatpush1.msra.mxu0 0.0
    %186 = vmatprep.subr.mxu0 0.0
    %187 = vmatpush1.msra.mxu0 0.0
    %188 = vmatprep.subr.mxu0 0.0
    %189 = vmatpush1.msra.mxu0 0.0
    %190 = vmatprep.subr.mxu0 0.0
    %191 = vmatpush1.msra.mxu0 0.0
    %192 = vmatprep.subr.mxu0 0.0
    %193 = vmatpush1.msra.mxu0 0.0
    %194 = vmatprep.subr.mxu0 0.0
    %195 = vmatpush1.msra.mxu0 0.0
    %196 = vmatprep.subr.mxu0 0.0
    %197 = vmatpush1.msra.mxu0 0.0
    %198 = vmatprep.subr.mxu0 0.0
    %199 = vmatpush1.msra.mxu0 0.0
    %200 = vmatprep.subr.mxu0 0.0
    %201 = vmatpush1.msra.mxu0 0.0
    %202 = vmatprep.subr.mxu0 0.0
    %203 = vmatpush1.msra.mxu0 0.0
    %204 = vmatprep.subr.mxu0 0.0
    %205 = vmatpush1.msra.mxu0 0.0
    %206 = vmatprep.subr.mxu0 0.0
    %207 = vmatpush1.msra.mxu0 0.0
    %208 = vmatprep.subr.mxu0 0.0
    %209 = vmatpush1.msra.mxu0 0.0
    %210 = vmatprep.subr.mxu0 0.0
    %211 = vmatpush1.msra.mxu0 0.0
    %212 = vmatprep.subr.mxu0 0.0
    %213 = vmatpush1.msra.mxu0 0.0
    %214 = vmatprep.subr.mxu0 0.0
    %215 = vmatpush1.msra.mxu0 0.0
    %216 = vmatprep.subr.mxu0 0.0
    %217 = vmatpush1.msra.mxu0 0.0
    %218 = vmatprep.subr.mxu0 0.0
    %219 = vmatpush1.msra.mxu0 0.0
    %220 = vmatprep.subr.mxu0 0.0
    %221 = vmatpush1.msra.mxu0 0.0
    %222 = vmatprep.subr.mxu0 0.0
    %223 = vmatpush1.msra.mxu0 0.0
    %224 = vmatprep.subr.mxu0 0.0
    %225 = vmatpush1.msra.mxu0 0.0
    %226 = vmatprep.subr.mxu0 0.0
    %227 = vmatpush1.msra.mxu0 0.0
    %228 = vmatprep.mubr.f32.mxu0 0.0
    %229 = vmatmul.mubr.f32.gmra.mrb[0].mxu0 %v162
    %v230 = vpop.f32.mrb[0].mxu0
    %v231 = vadd.f32 %v159, %v230
    %v232 = vpop.f32.mrb[0].mxu0
    %233 = vdwg.mxu0
    %234 = vst [vmem:[#allocation3] sm:$0x1] %v231
    // Predicated region
    $region22: #{tpu_custom_call.1} parent=1 // pred_check
      _
    $region23: #{tpu_custom_call.1} parent=1 // pred_check_branch
      %236 = sbr.rel (0) target = $region25
    $region24: #{tpu_custom_call.1} parent=1 // pred_region
      %s238 = ssub.s32 16, 16
      %239 = vsyncadd [#allocation4], %s238
      %s241 = sshll.u32 [#allocation3], 4
      %s242 = int_to_ptr.vmem [resolvable:$true] %s241
      %244 = dma.vmem_to_hbm [thread:$0]  %s242, 16, %s5, [#allocation4]
    $region25: #{tpu_custom_call.1} parent=1 // pred_fallthru
      _
    // Predicated region
    $region26: #{tpu_custom_call.1} parent=1 // pred_check
      _
    $region27: #{tpu_custom_call.1} parent=1 // pred_check_branch
      %246 = sbr.rel (0) target = $region29
    $region28: #{tpu_custom_call.1} parent=1 // pred_region
      %247 = dma.done [#allocation4], 16
    $region29: #{tpu_custom_call.1} parent=1 // pred_fallthru
      _
    %248 = vsyncpa [#allocation4], 1

</llo_original>
